<compile_context>
chip_gen: v5e
topology: v5e:2x2
jax: 0.10.0
libtpu: 0.0.40
codegen_flags: <defaults>
</compile_context>

<pallas_src>
import jax
import jax.numpy as jnp
from jax.experimental import pallas as pl
from jax.experimental.pallas import tpu as pltpu


def _frozen_bn_kernel(scale_ref, shift_ref, x_ref, o_ref):
    # Pure VPU elementwise: y = x * scale + shift. Compute in f32, cast back.
    x = x_ref[...].astype(jnp.float32)
    y = x * scale_ref[...] + shift_ref[...]     # (row_blk, 1) broadcasts over lanes
    o_ref[...] = y.astype(o_ref.dtype)


def _choose_row_block(rows, row_bytes, sublane_mult, target_bytes=2 * 1024 * 1024):
    """Pick a row-block: ~target_bytes of input per tile, sublane-aligned."""
    if rows * row_bytes <= target_bytes:
        return rows                                  # whole array in one tile
    blk = max(1, target_bytes // max(row_bytes, 1))
    blk = max(sublane_mult, (blk // sublane_mult) * sublane_mult)
    return min(blk, rows)


def frozen_batch_norm_2d(x, weight, bias, running_mean, running_var, eps=1e-5):
    """y = x * (w * rsqrt(rv + eps)) + (b - rm * w * rsqrt(rv + eps)), per channel."""
    N, C, H, W = x.shape
    rows, hw = N * C, H * W

    # Hoist the per-channel affine out of the kernel (tiny (C,) ops).
    scale = weight.astype(jnp.float32) * jax.lax.rsqrt(
        running_var.astype(jnp.float32) + jnp.float32(eps))
    shift = bias.astype(jnp.float32) - running_mean.astype(jnp.float32) * scale
    # One value per (n, c) row of the flattened view.
    scale_rows = jnp.broadcast_to(scale[None, :], (N, C)).reshape(rows, 1)
    shift_rows = jnp.broadcast_to(shift[None, :], (N, C)).reshape(rows, 1)

    x2d = x.reshape(rows, hw)

    # Sublane packing requirement of the activation dtype (f32:8, bf16:16, int8/fp8:32).
    itemsize = jnp.dtype(x.dtype).itemsize
    sublane_mult = {4: 8, 2: 16, 1: 32}.get(itemsize, 8)
    row_blk = _choose_row_block(rows, hw * itemsize, sublane_mult)
    grid = (pl.cdiv(rows, row_blk),)

    out2d = pl.pallas_call(
        _frozen_bn_kernel,
        out_shape=jax.ShapeDtypeStruct((rows, hw), x.dtype),
        grid=grid,
        in_specs=[
            pl.BlockSpec((row_blk, 1), lambda i: (i, 0)),    # scale per row
            pl.BlockSpec((row_blk, 1), lambda i: (i, 0)),    # shift per row
            pl.BlockSpec((row_blk, hw), lambda i: (i, 0)),   # x tile (lane-dense)
        ],
        out_specs=pl.BlockSpec((row_blk, hw), lambda i: (i, 0)),
        compiler_params=pltpu.CompilerParams(
            dimension_semantics=("parallel",),
            vmem_limit_bytes=32 * 1024 * 1024,
        ),
    )(scale_rows, shift_rows, x2d)

    return out2d.reshape(N, C, H, W)


def _reference(x, weight, bias, running_mean, running_var, eps=1e-5):
    w = weight.reshape(1, -1, 1, 1)
    b = bias.reshape(1, -1, 1, 1)
    rv = running_var.reshape(1, -1, 1, 1)
    rm = running_mean.reshape(1, -1, 1, 1)
    scale = w * jax.lax.rsqrt(rv + eps)
    return x * scale + (b - rm * scale)


if __name__ == "__main__":
    N, C, H, W = 2, 4, 16, 16
    key = jax.random.PRNGKey(0)
    kx, kw, kb, km, kv = jax.random.split(key, 5)

    x = jax.random.normal(kx, (N, C, H, W), dtype=jnp.float32)
    # __init__ default buffers are ones/zeros (identity); use random values
    # so the kernel does nontrivial work.
    weight = jax.random.normal(kw, (C,), dtype=jnp.float32)
    bias = jax.random.normal(kb, (C,), dtype=jnp.float32)
    running_mean = jax.random.normal(km, (C,), dtype=jnp.float32)
    running_var = jax.random.uniform(kv, (C,), dtype=jnp.float32,
                                     minval=0.5, maxval=2.0)

    # f32 path
    y = frozen_batch_norm_2d(x, weight, bias, running_mean, running_var)
    y = jax.block_until_ready(y)
    y_ref = _reference(x, weight, bias, running_mean, running_var)
    assert y.shape == (N, C, H, W) and y.dtype == jnp.float32
    assert jnp.allclose(y, y_ref, atol=1e-5, rtol=1e-5)

    # bf16 path (exercises the explicit output cast + bf16 sublane alignment)
    x_bf16 = x.astype(jnp.bfloat16)
    y_bf16 = frozen_batch_norm_2d(x_bf16, weight, bias, running_mean, running_var)
    y_bf16 = jax.block_until_ready(y_bf16)
    y_bf16_ref = _reference(x_bf16.astype(jnp.float32), weight, bias,
                            running_mean, running_var)
    assert y_bf16.dtype == jnp.bfloat16
    assert jnp.allclose(y_bf16.astype(jnp.float32), y_bf16_ref,
                        atol=2e-2, rtol=2e-2)

    print("KERNEL_OK")
</pallas_src>

<mosaic_0001>
module attributes {stable_mosaic.version = 11 : i64} {
  func.func @_frozen_bn_kernel(%arg0: i32, %arg1: memref<8x1xf32, #tpu.memory_space<vmem>>, %arg2: memref<8x1xf32, #tpu.memory_space<vmem>>, %arg3: memref<8x256xf32, #tpu.memory_space<vmem>>, %arg4: memref<8x256xf32, #tpu.memory_space<vmem>>) attributes {dimension_semantics = [#tpu.dimension_semantics<parallel>], iteration_bounds = array<i64: 1>, scalar_prefetch = 0 : i64, scratch_operands = 0 : i64, tpu.core_type = #tpu.core_type<tc>, window_params = [{transform_indices = @transform_0, window_bounds = array<i64: 8, 1>}, {transform_indices = @transform_1, window_bounds = array<i64: 8, 1>}, {transform_indices = @transform_2, window_bounds = array<i64: 8, 256>}, {transform_indices = @transform_3, window_bounds = array<i64: 8, 256>}]} {
    %c0 = arith.constant 0 : index
    %c0_0 = arith.constant 0 : index
    %0 = vector.load %arg3[%c0, %c0_0] : memref<8x256xf32, #tpu.memory_space<vmem>>, vector<8x256xf32>
    %c0_1 = arith.constant 0 : index
    %c0_2 = arith.constant 0 : index
    %1 = vector.load %arg1[%c0_1, %c0_2] : memref<8x1xf32, #tpu.memory_space<vmem>>, vector<8x1xf32>
    %2 = vector.broadcast %1 : vector<8x1xf32> to vector<8x256xf32>
    %3 = arith.mulf %0, %2 : vector<8x256xf32>
    %c0_3 = arith.constant 0 : index
    %c0_4 = arith.constant 0 : index
    %4 = vector.load %arg2[%c0_3, %c0_4] : memref<8x1xf32, #tpu.memory_space<vmem>>, vector<8x1xf32>
    %5 = vector.broadcast %4 : vector<8x1xf32> to vector<8x256xf32>
    %6 = arith.addf %3, %5 : vector<8x256xf32>
    %c0_5 = arith.constant 0 : index
    %c0_6 = arith.constant 0 : index
    %7 = vector.load %arg4[%c0_5, %c0_6] : memref<8x256xf32, #tpu.memory_space<vmem>>, vector<8x256xf32>
    tpu.vector_store %arg4[%c0_5, %c0_6], %6 {strides = array<i32>} : memref<8x256xf32, #tpu.memory_space<vmem>>, vector<8x256xf32>,
    return
  }
  func.func @transform_0(%arg0: i32) -> (i32, i32) {
    %c0_i32 = arith.constant 0 : i32
    %c0_i32_0 = arith.constant 0 : i32
    return %arg0, %c0_i32 : i32, i32
  }
  func.func @transform_1(%arg0: i32) -> (i32, i32) {
    %c0_i32 = arith.constant 0 : i32
    %c0_i32_0 = arith.constant 0 : i32
    return %arg0, %c0_i32 : i32, i32
  }
  func.func @transform_2(%arg0: i32) -> (i32, i32) {
    %c0_i32 = arith.constant 0 : i32
    %c0_i32_0 = arith.constant 0 : i32
    return %arg0, %c0_i32 : i32, i32
  }
  func.func @transform_3(%arg0: i32) -> (i32, i32) {
    %c0_i32 = arith.constant 0 : i32
    %c0_i32_0 = arith.constant 0 : i32
    return %arg0, %c0_i32 : i32, i32
  }
}

</mosaic_0001>

<llo_original>
// kernel: tpu_custom_call.1
$region0: #{tpu_custom_call.1}
  #allocation0 [shape = 'u32[]', space=smem, size = 0x4, offset = 0x4, fixed_abs, tag = 'smem constant byte address 0x4 - core index']
  #allocation1 [shape = 'u32[72,128]{1,0:T(1,128)}', space=vmem, size = 0x9000, scoped, tag = 'internal scratch']
  %s0 = inlined_call_operand.vmem [shape: f32[8,1], index: 0, kind: input, shape index: {}]
  %s1 = inlined_call_operand.vmem [shape: f32[8,1], index: 1, kind: input, shape index: {}]
  %s2 = inlined_call_operand.vmem [shape: f32[8,256], index: 2, kind: input, shape index: {}]
  %s3 = inlined_call_operand.hbm [shape: f32[8,256], index: 3, kind: output, shape index: {}]
  %s4 = sld [smem:[#allocation0]]
  $region22: #{tpu_custom_call.1} parent=0
    _
  %s6 = ssub.s32 1, %s4
  %s7 = scalar_select 0, %s6, %s4
  $region1: #{tpu_custom_call.1} parent=0
    #allocation2 [shape = 'u8[8192]{0}', space=vmem, size = 0x2000, scoped, tag = 'output window, operand 0, single buffered']
    #allocation3 [shape = 's32[1]{0}', space=sflag, size = 0x4, scoped, tag = 'scoped memory for tpu_custom_call.1']
    %8 = vsyncpa [#allocation3], 0
    // Predicated region
    $region2: #{tpu_custom_call.1} parent=1 // pred_check
      _
    $region3: #{tpu_custom_call.1} parent=1 // pred_check_branch
      %10 = sbr.rel (0) target = $region5
    $region4: #{tpu_custom_call.1} parent=1 // pred_region
      _
    $region5: #{tpu_custom_call.1} parent=1 // pred_fallthru
      _
    // Predicated region
    $region6: #{tpu_custom_call.1} parent=1 // pred_check
      _
    $region7: #{tpu_custom_call.1} parent=1 // pred_check_branch
      %12 = sbr.rel (0) target = $region9
    $region8: #{tpu_custom_call.1} parent=1 // pred_region
      _
    $region9: #{tpu_custom_call.1} parent=1 // pred_fallthru
      _
    // Predicated region
    $region10: #{tpu_custom_call.1} parent=1 // pred_check
      _
    $region11: #{tpu_custom_call.1} parent=1 // pred_check_branch
      %14 = sbr.rel (0) target = $region13
    $region12: #{tpu_custom_call.1} parent=1 // pred_region
      _
    $region13: #{tpu_custom_call.1} parent=1 // pred_fallthru
      _
    %v15 = vld [vmem:[%s2] sm:$0xff]
    %v16 = vld [vmem:[%s2 + $0x8] sm:$0xff]
    %v17 = vld [vmem:[%s0] sm:$0xff]
    %19 = vset.pattern.permute.xlu0 0
    %20 = vperm.xlu0 %19, %v17
    %v21 = vpop.permute.xlu0 %20
    %v23 = vmul.f32 %v15, %v21
    %v24 = vmul.f32 %v16, %v21
    %v25 = vld [vmem:[%s1] sm:$0xff]
    %27 = vset.pattern.permute.xlu0 0
    %28 = vperm.xlu0 %27, %v25
    %v29 = vpop.permute.xlu0 %28
    %v31 = vadd.f32 %v23, %v29
    %v32 = vadd.f32 %v24, %v29
    %33 = vst [vmem:[#allocation2] sm:$0xff] %v31
    %34 = vst [vmem:[#allocation2 + $0x8] sm:$0xff] %v32
    // Predicated region
    $region14: #{tpu_custom_call.1} parent=1 // pred_check
      _
    $region15: #{tpu_custom_call.1} parent=1 // pred_check_branch
      %36 = sbr.rel (0) target = $region17
    $region16: #{tpu_custom_call.1} parent=1 // pred_region
      %38 = vsyncadd [#allocation3], 0
      %s40 = sshll.u32 [#allocation2], 4
      %s41 = int_to_ptr.vmem [resolvable:$true] %s40
      %s42 = sshll.u32 %s3, 4
      %s43 = int_to_ptr.hbm [resolvable:$true] %s42
      %45 = dma.vmem_to_hbm [thread:$0]  %s41, 256, %s43, [#allocation3]
    $region17: #{tpu_custom_call.1} parent=1 // pred_fallthru
      _
    // Predicated region
    $region18: #{tpu_custom_call.1} parent=1 // pred_check
      _
    $region19: #{tpu_custom_call.1} parent=1 // pred_check_branch
      %47 = sbr.rel (0) target = $region21
    $region20: #{tpu_custom_call.1} parent=1 // pred_region
      %49 = dma.done [#allocation3], 256
    $region21: #{tpu_custom_call.1} parent=1 // pred_fallthru
      _
    %50 = vsyncpa [#allocation3], 1

</llo_original>
